<compile_context>
chip_gen: v7x
topology: tpu7x:2x2x1
jax: 0.10.0
libtpu: 0.0.40
codegen_flags: <defaults>
</compile_context>

<pallas_src>
import numpy as np
import jax
import jax.numpy as jnp
from jax import lax
from jax.experimental import pallas as pl
from jax.experimental.pallas import tpu as pltpu


def _bilinear_matrix(in_size: int, out_size: int) -> np.ndarray:
    """Row-interpolation matrix matching PyTorch bilinear, align_corners=False."""
    scale = in_size / out_size
    m = np.zeros((out_size, in_size), dtype=np.float32)
    for o in range(out_size):
        src = (o + 0.5) * scale - 0.5
        if src < 0.0:
            src = 0.0
        i0 = min(int(np.floor(src)), in_size - 1)
        i1 = min(i0 + 1, in_size - 1)
        w1 = src - i0
        m[o, i0] += 1.0 - w1
        m[o, i1] += w1
    return m


def interp_block(x, conv_weight, conv_bias, scale: int):
    B, C_in, H, W = x.shape
    C_out, _, KH, KW = conv_weight.shape
    assert (KH, KW) == (3, 3), "kernel_size=3 (padding='same', pad=1)"
    H_out, W_out = H * scale, W * scale
    Kx = C_in * W + 1              # contraction depth (+1 = folded bias row)
    N_out = C_out * W_out          # lane-dense output width (multiple of 128 here)

    # ---- host-side constant matrices (shape-only, numpy) -------------------
    wh = _bilinear_matrix(H, H_out)                      # (H_out, H)
    ww = _bilinear_matrix(W, W_out)                      # (W_out, W)
    wh_pad = np.concatenate([wh[:1], wh, wh[-1:]], 0)    # (H_out+2, H) replicate pad
    ww_pad = np.concatenate([ww[:1], ww, ww[-1:]], 0)    # (W_out+2, W)
    # 3 dy-shifted row matrices stacked -> one (3*H_out, H) matrix (tap shift
    # folded into the matrix; no in-kernel slicing of a padded map).
    wh3 = np.concatenate([wh_pad[d:d + H_out] for d in range(3)], 0)   # (3*H_out, H)
    ww_taps = np.stack([ww_pad[d:d + W_out] for d in range(3)], 0)     # (3, W_out, W)

    wh3 = jnp.asarray(wh3, jnp.bfloat16)
    ww_taps_j = jnp.asarray(ww_taps, jnp.float32)

    # ---- fold conv weight + col-taps (+ bias) into F[dy] -------------------
    # F[d, ci*W + w, co*W_out + j] = sum_dx weight[co,ci,d,dx] * ww_pad[j+dx, w]
    f = jnp.einsum('ocde,ejw->dcwoj', conv_weight, ww_taps_j)
    f = f.reshape(3, C_in * W, N_out)
    bias_row = jnp.zeros((3, 1, N_out), f.dtype)
    bias_row = bias_row.at[0, 0, :].set(jnp.repeat(conv_bias, W_out))
    f = jnp.concatenate([f, bias_row], axis=1).astype(jnp.bfloat16)    # (3, Kx, N_out)

    # ---- x: NCHW -> (B, H, C_in*W) (+ ones column for the bias), bf16 ------
    xr = jnp.transpose(x, (0, 2, 1, 3)).reshape(B, H, C_in * W)
    xr = jnp.concatenate([xr, jnp.ones((B, H, 1), x.dtype)], axis=-1)
    xr = xr.astype(jnp.bfloat16)                                       # (B, H, Kx)

    def kernel(x_ref, wh_ref, f_ref, o_ref):
        xb = x_ref[0]                                                  # (H, Kx) bf16
        # Row interpolation (+ replicate pad + dy shifts): ONE 2-D matmul
        # (3*H_out, H) @ (H, C_in*W+1), f32 accumulation.
        u = jnp.dot(wh_ref[...], xb, preferred_element_type=jnp.float32)
        u = u.astype(jnp.bfloat16)                                     # (3*H_out, Kx)
        # Col-interp + 3x3 conv + bias: 3 accumulated matmuls, K = C_in*W+1.
        # Row-block views of u are static and sublane-aligned (dy*H_out % 8 == 0).
        acc = jnp.zeros((H_out, N_out), jnp.float32)
        for d in range(3):
            acc = acc + jnp.dot(u[d * H_out:(d + 1) * H_out, :], f_ref[d],
                                preferred_element_type=jnp.float32)
        # ReLU in f32, then one lane-dense (H_out, C_out*W_out) store.
        o_ref[0] = jnp.maximum(acc, 0.0).astype(o_ref.dtype)

    y = pl.pallas_call(
        kernel,
        out_shape=jax.ShapeDtypeStruct((B, H_out, N_out), x.dtype),
        grid_spec=pltpu.PrefetchScalarGridSpec(
            num_scalar_prefetch=0,
            grid=(B,),
            in_specs=[
                pl.BlockSpec((1, H, Kx), lambda b: (b, 0, 0)),
                pl.BlockSpec((3 * H_out, H), lambda b: (0, 0)),
                pl.BlockSpec((3, Kx, N_out), lambda b: (0, 0, 0)),
            ],
            out_specs=pl.BlockSpec((1, H_out, N_out), lambda b: (b, 0, 0)),
        ),
        compiler_params=pltpu.CompilerParams(
            dimension_semantics=("parallel",),      # B=2 -> both v7x TCs busy
            vmem_limit_bytes=32 * 1024 * 1024,      # explicit, well under any chip
        ),
    )(xr, wh3, f)

    # Back to NCHW outside the kernel (pure layout plumbing).
    return y.reshape(B, H_out, C_out, W_out).transpose(0, 2, 1, 3)


def interp_block_reference(x, conv_weight, conv_bias, scale: int):
    """Pure-JAX f32 reference (same math as PyTorch InterpBlock)."""
    B, C_in, H, W = x.shape
    H_out, W_out = H * scale, W * scale
    wh = jnp.asarray(_bilinear_matrix(H, H_out))
    ww = jnp.asarray(_bilinear_matrix(W, W_out))
    up = jnp.einsum('oh,bchw,pw->bcop', wh, x, ww,
                    precision=lax.Precision.HIGHEST)
    up_pad = jnp.pad(up, ((0, 0), (0, 0), (1, 1), (1, 1)), mode='edge')
    out = lax.conv_general_dilated(
        up_pad, conv_weight, window_strides=(1, 1), padding='VALID',
        dimension_numbers=('NCHW', 'OIHW', 'NCHW'),
        precision=lax.Precision.HIGHEST)
    out = out + conv_bias.reshape(1, -1, 1, 1)
    return jnp.maximum(out, 0.0)


if __name__ == "__main__":
    B, C_in, C_out, H, W, SCALE = 2, 4, 8, 16, 16, 2

    key = jax.random.PRNGKey(0)
    kx, kw, kb = jax.random.split(key, 3)
    x = jax.random.normal(kx, (B, C_in, H, W), dtype=jnp.float32)
    conv_weight = 0.1 * jax.random.normal(kw, (C_out, C_in, 3, 3), dtype=jnp.float32)
    conv_bias = 0.1 * jax.random.normal(kb, (C_out,), dtype=jnp.float32)

    out = jax.block_until_ready(interp_block(x, conv_weight, conv_bias, SCALE))
    ref = jax.block_until_ready(
        interp_block_reference(x, conv_weight, conv_bias, SCALE))

    assert out.shape == (B, C_out, H * SCALE, W * SCALE), out.shape
    # bf16 operands with f32 accumulation -> widened tolerance vs. pure-f32.
    max_err = jnp.max(jnp.abs(out - ref))
    assert jnp.allclose(out, ref, atol=2.5e-2, rtol=2.5e-2), f"max abs err = {max_err}"

    print("KERNEL_OK")
</pallas_src>

<mosaic_0001>
module attributes {stable_mosaic.version = 11 : i64} {
  func.func @kernel(%arg0: i32, %arg1: memref<1x16x65xbf16, #tpu.memory_space<vmem>>, %arg2: memref<96x16xbf16, #tpu.memory_space<vmem>>, %arg3: memref<3x65x256xbf16, #tpu.memory_space<vmem>>, %arg4: memref<1x32x256xf32, #tpu.memory_space<vmem>>) attributes {dimension_semantics = [#tpu.dimension_semantics<parallel>], iteration_bounds = array<i64: 2>, scalar_prefetch = 0 : i64, scratch_operands = 0 : i64, tpu.core_type = #tpu.core_type<tc>, window_params = [{transform_indices = @transform_0, window_bounds = array<i64: 1, 16, 65>}, {pipeline_mode = #tpu.pipeline_mode<synchronous>, transform_indices = @transform_1, window_bounds = array<i64: 96, 16>}, {pipeline_mode = #tpu.pipeline_mode<synchronous>, transform_indices = @transform_2, window_bounds = array<i64: 3, 65, 256>}, {transform_indices = @transform_3, window_bounds = array<i64: 1, 32, 256>}]} {
    %c0 = arith.constant 0 : index
    %c0_0 = arith.constant 0 : index
    %c0_1 = arith.constant 0 : index
    %0 = vector.load %arg1[%c0, %c0_0, %c0_1] : memref<1x16x65xbf16, #tpu.memory_space<vmem>>, vector<1x16x65xbf16>
    %1 = vector.shape_cast %0 : vector<1x16x65xbf16> to vector<16x65xbf16>
    %c0_2 = arith.constant 0 : index
    %c0_3 = arith.constant 0 : index
    %2 = vector.load %arg2[%c0_2, %c0_3] : memref<96x16xbf16, #tpu.memory_space<vmem>>, vector<96x16xbf16>
    %cst = arith.constant dense<0.000000e+00> : vector<96x65xf32>
    %3 = tpu.matmul %2, %1, %cst {dimension_numbers = #tpu.dot_dimension_numbers<[1], [0], [0], [1], [0, 0, 1, 1], [], []>} : vector<96x16xbf16>, vector<16x65xbf16>, vector<96x65xf32> -> vector<96x65xf32>
    %4 = arith.truncf %3 : vector<96x65xf32> to vector<96x65xbf16>
    %cst_4 = arith.constant 0.000000e+00 : f32
    %5 = vector.broadcast %cst_4 : f32 to vector<32x256xf32>
    %6 = vector.extract_strided_slice %4 {offsets = [0, 0], sizes = [32, 65], strides = [1, 1]} : vector<96x65xbf16> to vector<32x65xbf16>
    %c0_5 = arith.constant 0 : index
    %c0_6 = arith.constant 0 : index
    %c0_7 = arith.constant 0 : index
    %7 = vector.load %arg3[%c0_5, %c0_6, %c0_7] : memref<3x65x256xbf16, #tpu.memory_space<vmem>>, vector<1x65x256xbf16>
    %8 = vector.shape_cast %7 : vector<1x65x256xbf16> to vector<65x256xbf16>
    %cst_8 = arith.constant dense<0.000000e+00> : vector<32x256xf32>
    %9 = tpu.matmul %6, %8, %cst_8 {dimension_numbers = #tpu.dot_dimension_numbers<[1], [0], [0], [1], [0, 0, 1, 1], [], []>} : vector<32x65xbf16>, vector<65x256xbf16>, vector<32x256xf32> -> vector<32x256xf32>
    %10 = arith.addf %5, %9 : vector<32x256xf32>
    %11 = vector.extract_strided_slice %4 {offsets = [32, 0], sizes = [32, 65], strides = [1, 1]} : vector<96x65xbf16> to vector<32x65xbf16>
    %c1 = arith.constant 1 : index
    %c0_9 = arith.constant 0 : index
    %c0_10 = arith.constant 0 : index
    %12 = vector.load %arg3[%c1, %c0_9, %c0_10] : memref<3x65x256xbf16, #tpu.memory_space<vmem>>, vector<1x65x256xbf16>
    %13 = vector.shape_cast %12 : vector<1x65x256xbf16> to vector<65x256xbf16>
    %cst_11 = arith.constant dense<0.000000e+00> : vector<32x256xf32>
    %14 = tpu.matmul %11, %13, %cst_11 {dimension_numbers = #tpu.dot_dimension_numbers<[1], [0], [0], [1], [0, 0, 1, 1], [], []>} : vector<32x65xbf16>, vector<65x256xbf16>, vector<32x256xf32> -> vector<32x256xf32>
    %15 = arith.addf %10, %14 : vector<32x256xf32>
    %16 = vector.extract_strided_slice %4 {offsets = [64, 0], sizes = [32, 65], strides = [1, 1]} : vector<96x65xbf16> to vector<32x65xbf16>
    %c2 = arith.constant 2 : index
    %c0_12 = arith.constant 0 : index
    %c0_13 = arith.constant 0 : index
    %17 = vector.load %arg3[%c2, %c0_12, %c0_13] : memref<3x65x256xbf16, #tpu.memory_space<vmem>>, vector<1x65x256xbf16>
    %18 = vector.shape_cast %17 : vector<1x65x256xbf16> to vector<65x256xbf16>
    %cst_14 = arith.constant dense<0.000000e+00> : vector<32x256xf32>
    %19 = tpu.matmul %16, %18, %cst_14 {dimension_numbers = #tpu.dot_dimension_numbers<[1], [0], [0], [1], [0, 0, 1, 1], [], []>} : vector<32x65xbf16>, vector<65x256xbf16>, vector<32x256xf32> -> vector<32x256xf32>
    %20 = arith.addf %15, %19 : vector<32x256xf32>
    %cst_15 = arith.constant 0.000000e+00 : f32
    %21 = vector.broadcast %cst_15 : f32 to vector<32x256xf32>
    %22 = arith.maximumf %20, %21 : vector<32x256xf32>
    %c0_16 = arith.constant 0 : index
    %c0_17 = arith.constant 0 : index
    %c0_18 = arith.constant 0 : index
    %23 = vector.load %arg4[%c0_16, %c0_17, %c0_18] : memref<1x32x256xf32, #tpu.memory_space<vmem>>, vector<1x32x256xf32>
    %24 = vector.shape_cast %23 : vector<1x32x256xf32> to vector<32x256xf32>
    %25 = vector.shape_cast %22 : vector<32x256xf32> to vector<1x32x256xf32>
    tpu.vector_store %arg4[%c0_16, %c0_17, %c0_18], %25 {strides = array<i32>} : memref<1x32x256xf32, #tpu.memory_space<vmem>>, vector<1x32x256xf32>,
    return
  }
  func.func @transform_0(%arg0: i32) -> (i32, i32, i32) {
    %c0_i32 = arith.constant 0 : i32
    %c0_i32_0 = arith.constant 0 : i32
    %c0_i32_1 = arith.constant 0 : i32
    return %arg0, %c0_i32, %c0_i32_0 : i32, i32, i32
  }
  func.func @transform_1(%arg0: i32) -> (i32, i32) {
    %c0_i32 = arith.constant 0 : i32
    %c0_i32_0 = arith.constant 0 : i32
    %c0_i32_1 = arith.constant 0 : i32
    return %c0_i32, %c0_i32_0 : i32, i32
  }
  func.func @transform_2(%arg0: i32) -> (i32, i32, i32) {
    %c0_i32 = arith.constant 0 : i32
    %c0_i32_0 = arith.constant 0 : i32
    %c0_i32_1 = arith.constant 0 : i32
    %c0_i32_2 = arith.constant 0 : i32
    return %c0_i32, %c0_i32_0, %c0_i32_1 : i32, i32, i32
  }
  func.func @transform_3(%arg0: i32) -> (i32, i32, i32) {
    %c0_i32 = arith.constant 0 : i32
    %c0_i32_0 = arith.constant 0 : i32
    %c0_i32_1 = arith.constant 0 : i32
    return %arg0, %c0_i32, %c0_i32_0 : i32, i32, i32
  }
}

</mosaic_0001>

<llo_original>
// kernel: tpu_custom_call.1
$region0: #{tpu_custom_call.1}
  #allocation0 [shape = 'u32[]', space=smem, size = 0x4, offset = 0x4, fixed_abs, tag = 'smem constant byte address 0x4 - core index']
  #allocation1 [shape = 'u32[144,128]{1,0:T(1,128)}', space=vmem, size = 0x12000, scoped, tag = 'internal scratch']
  %s0 = inlined_call_operand.vmem [shape: bf16[2,16,65], index: 0, kind: input, shape index: {}]
  %s1 = inlined_call_operand.vmem [shape: bf16[96,16], index: 1, kind: input, shape index: {}]
  %s2 = inlined_call_operand.hbm [shape: bf16[3,65,256], index: 2, kind: input, shape index: {}]
  %s3 = inlined_call_operand.hbm [shape: f32[2,32,256], index: 3, kind: output, shape index: {}]
  %s4 = sld [smem:[#allocation0]]
  $region49: #{tpu_custom_call.1} parent=0
    _
  %s6 = ssub.s32 1, %s4
  %s7 = scalar_select 0, %s6, %s4
  $region1: #{tpu_custom_call.1} parent=0
    #allocation2 [shape = 'u8[110592]{0}', space=vmem, size = 0x1b000, scoped, tag = 'input window, operand 2, single buffered']
    #allocation3 [shape = 's32[2]{0}', space=sflag, size = 0x8, scoped, tag = 'scoped memory for tpu_custom_call.1']
    #allocation4 [shape = 's32[2]{0}', space=sflag, size = 0x8, scoped, tag = 'scoped memory for tpu_custom_call.1']
    #allocation5 [shape = 'u8[65536]{0}', space=vmem, size = 0x10000, scoped, tag = 'output window, operand 0']
    %8 = vsyncpa [#allocation3], 0
    %9 = vsyncpa [#allocation4], 0
    %s10 = scalar_lea.sflag [#allocation4], 1
    %11 = vsyncpa %s10, 0
    loop: start=0, step=1, limit=4
    $region2: #{tpu_custom_call.1} parent=1 // loop_pre_header
      _
    $region3: #{tpu_custom_call.1} parent=1 // loop_header
      %s13 = sphi 0, %s17
      %p14 = scmp.ge.s32.totalorder %s13, 4
      %s23 = sphi 0, %s25
      %s26 = sphi 0, %s23
      %s27 = sphi 0, %s26
      %s43 = sphi 0, %s27
      %s47 = sphi 0, %s47
      %s49 = sphi 0, %s47
      %s50 = sphi 0, %s49
      %s64 = sphi 0, %s50
      %s68 = sphi 0, %s68
      %s70 = sphi 0, %s68
      %s71 = sphi 0, %s70
      %s85 = sphi 0, %s71
      %s91 = sphi 0, %s93
      %s94 = sphi 0, %s91
      %s95 = sphi 0, %s94
      %s111 = sphi 0, %s95
    $region4: #{tpu_custom_call.1} parent=1 // loop_header_branch
      %16 = sbr.rel (%p14) target = $region8
    $region5: #{tpu_custom_call.1} parent=1 // loop_body
      %s18 = ssub.s32 %s13, 1
      %s19 = ssub.s32 %s13, 2
      %s20 = sadd.s32 %s13, 1
      %s21 = ssub.s32 %s13, %s20
      %p22 = scmp.eq.s32.totalorder %s21, 0
      %s24 = sadd.s32 %s23, 1
      %s25 = scalar_select %p22, %s23, %s24
      %p28 = pneg %p22
      %p29 = scmp.eq.s32.totalorder %s13, 1
      %p30 = por %p28, %p29
      %p31 = scmp.ne.s32.totalorder %s23, %s26
      %p32 = scmp.eq.s32.totalorder %s13, 0
      %p33 = por %p31, %p32
      %p34 = scmp.ne.s32.totalorder %s23, %s26
      %p35 = scmp.eq.s32.totalorder %s18, 1
      %p36 = por %p34, %p35
      %p37 = scmp.ne.s32.totalorder %s26, %s27
      %p38 = scmp.eq.s32.totalorder %s18, 0
      %p39 = por %p37, %p38
      %p40 = scmp.ne.s32.totalorder %s26, %s27
      %p41 = scmp.eq.s32.totalorder %s19, 1
      %p42 = por %p40, %p41
      %p44 = scmp.ne.s32.totalorder %s27, %s43
      %p45 = scmp.eq.s32.totalorder %s19, 0
      %p46 = por %p44, %p45
      %s48 = sadd.s32 %s47, 1
      %p51 = scmp.eq.s32.totalorder %s13, 1
      %p52 = scmp.ne.s32.totalorder %s47, %s49
      %p53 = scmp.eq.s32.totalorder %s13, 0
      %p54 = por %p52, %p53
      %p55 = scmp.ne.s32.totalorder %s47, %s49
      %p56 = scmp.eq.s32.totalorder %s18, 1
      %p57 = por %p55, %p56
      %p58 = scmp.ne.s32.totalorder %s49, %s50
      %p59 = scmp.eq.s32.totalorder %s18, 0
      %p60 = por %p58, %p59
      %p61 = scmp.ne.s32.totalorder %s49, %s50
      %p62 = scmp.eq.s32.totalorder %s19, 1
      %p63 = por %p61, %p62
      %p65 = scmp.ne.s32.totalorder %s50, %s64
      %p66 = scmp.eq.s32.totalorder %s19, 0
      %p67 = por %p65, %p66
      %s69 = sadd.s32 %s68, 1
      %p72 = scmp.eq.s32.totalorder %s13, 1
      %p73 = scmp.ne.s32.totalorder %s68, %s70
      %p74 = scmp.eq.s32.totalorder %s13, 0
      %p75 = por %p73, %p74
      %p76 = scmp.ne.s32.totalorder %s68, %s70
      %p77 = scmp.eq.s32.totalorder %s18, 1
      %p78 = por %p76, %p77
      %p79 = scmp.ne.s32.totalorder %s70, %s71
      %p80 = scmp.eq.s32.totalorder %s18, 0
      %p81 = por %p79, %p80
      %p82 = scmp.ne.s32.totalorder %s70, %s71
      %p83 = scmp.eq.s32.totalorder %s19, 1
      %p84 = por %p82, %p83
      %p86 = scmp.ne.s32.totalorder %s71, %s85
      %p87 = scmp.eq.s32.totalorder %s19, 0
      %p88 = por %p86, %p87
      %s89 = ssub.s32 %s13, %s20
      %p90 = scmp.eq.s32.totalorder %s89, 0
      %s92 = sadd.s32 %s91, 1
      %s93 = scalar_select %p90, %s91, %s92
      %p96 = pneg %p90
      %p97 = scmp.eq.s32.totalorder %s13, 1
      %p98 = por %p96, %p97
      %p99 = scmp.ne.s32.totalorder %s91, %s94
      %p100 = scmp.eq.s32.totalorder %s13, 0
      %p101 = por %p99, %p100
      %p102 = scmp.ne.s32.totalorder %s91, %s94
      %p103 = scmp.eq.s32.totalorder %s18, 1
      %p104 = por %p102, %p103
      %p105 = scmp.ne.s32.totalorder %s94, %s95
      %p106 = scmp.eq.s32.totalorder %s18, 0
      %p107 = por %p105, %p106
      %p108 = scmp.ne.s32.totalorder %s94, %s95
      %p109 = scmp.eq.s32.totalorder %s19, 1
      %p110 = por %p108, %p109
      %p112 = scmp.ne.s32.totalorder %s95, %s111
      %p113 = scmp.eq.s32.totalorder %s19, 0
      %p114 = por %p112, %p113
      %p115 = scmp.le.s32.totalorder 1, %s13
      %p116 = scmp.lt.s32.totalorder %s13, 3
      %p117 = pnand %p115, %p116
      %p118 = pneg %p117
      // Predicated region
      $region9: #{tpu_custom_call.1} parent=5 // pred_check
        _
      $region10: #{tpu_custom_call.1} parent=5 // pred_check_branch
        %120 = sbr.rel (%p117) target = $region12
      $region11: #{tpu_custom_call.1} parent=5 // pred_region
        %s121 = ssub.s32 %s13, 1
        // Predicated region
        $region13: #{tpu_custom_call.1} parent=11 // pred_check
          %p122 = pneg %p60
        $region14: #{tpu_custom_call.1} parent=11 // pred_check_branch
          %124 = sbr.rel (%p122) target = $region16
        $region15: #{tpu_custom_call.1} parent=11 // pred_region
          _
        $region16: #{tpu_custom_call.1} parent=11 // pred_fallthru
          _
        // Predicated region
        $region17: #{tpu_custom_call.1} parent=11 // pred_check
          %p125 = pneg %p81
        $region18: #{tpu_custom_call.1} parent=11 // pred_check_branch
          %127 = sbr.rel (%p125) target = $region20
        $region19: #{tpu_custom_call.1} parent=11 // pred_region
          %s129 = ssub.s32 3456, 3456
          %130 = vsyncadd [#allocation3], %s129
          %s131 = sshll.u32 [#allocation2], 4
          %s132 = int_to_ptr.vmem [resolvable:$true] %s131
          %137 = dma.hbm_to_vmem [thread:$0]  %s2, 3456, %s132, [#allocation3], 128, 128, 8
        $region20: #{tpu_custom_call.1} parent=11 // pred_fallthru
          _
      $region12: #{tpu_custom_call.1} parent=5 // pred_fallthru
        _
      %p138 = scmp.lt.s32.totalorder %s13, 2
      // Predicated region
      $region21: #{tpu_custom_call.1} parent=5 // pred_check
        %p139 = pneg %p138
      $region22: #{tpu_custom_call.1} parent=5 // pred_check_branch
        %141 = sbr.rel (%p139) target = $region24
      $region23: #{tpu_custom_call.1} parent=5 // pred_region
        // Predicated region
        $region25: #{tpu_custom_call.1} parent=23 // pred_check
          %p142 = pneg %p33
        $region26: #{tpu_custom_call.1} parent=23 // pred_check_branch
          %144 = sbr.rel (%p142) target = $region28
        $region27: #{tpu_custom_call.1} parent=23 // pred_region
          %p145 = scmp.lt.s32.totalorder %s13, 1
          %s146 = scalar_select %p145, %s13, 1
          %s147 = smul.addr %s146, 2
          %s148 = smul.addr %s147, 4
          %s149 = scalar_lea.vmem %s0, %s148
        $region28: #{tpu_custom_call.1} parent=23 // pred_fallthru
          _
      $region24: #{tpu_custom_call.1} parent=5 // pred_fallthru
        _
      %p150 = scmp.le.s32.totalorder 1, %s13
      %p151 = scmp.lt.s32.totalorder %s13, 3
      %p152 = pnand %p150, %p151
      %p153 = pneg %p152
      // Predicated region
      $region29: #{tpu_custom_call.1} parent=5 // pred_check
        _
      $region30: #{tpu_custom_call.1} parent=5 // pred_check_branch
        %155 = sbr.rel (%p152) target = $region32
      $region31: #{tpu_custom_call.1} parent=5 // pred_region
        %s156 = ssub.s32 %s13, 1
        // Predicated region
        $region33: #{tpu_custom_call.1} parent=31 // pred_check
          %p157 = pneg %p81
        $region34: #{tpu_custom_call.1} parent=31 // pred_check_branch
          %159 = sbr.rel (%p157) target = $region36
        $region35: #{tpu_custom_call.1} parent=31 // pred_region
          %160 = dma.done [#allocation3], 3456
        $region36: #{tpu_custom_call.1} parent=31 // pred_fallthru
          _
        %p161 = scmp.lt.s32.totalorder %s18, 1
        %s162 = scalar_select %p161, %s18, 1
        %s163 = smul.addr %s162, 2
        %s164 = smul.addr %s163, 4
        %s165 = scalar_lea.vmem %s0, %s164
        %p166 = pneg %p39
        %p167 = pneg %p36
        %p168 = pneg %p60
        %p169 = pneg %p57
        %p170 = pneg %p81
        %p171 = pneg %p78
        %p172 = pneg %p107
        %p173 = pneg %p104
        %s174 = sand.u32 %s94, 1
        %s175 = scalar_lea.sflag [#allocation4], %s174
        %s176 = sand.u32 %s94, 1
        %s177 = smul.addr %s176, 64
        %s178 = scalar_lea.vmem [#allocation5], %s177
        %p179 = scmp.lt.s32.totalorder %s18, 1
        %s180 = scalar_select %p179, %s18, 1
        %s181 = smul.addr %s180, 2
        %s182 = smul.addr %s181, 4
        %s183 = scalar_lea.vmem %s0, %s182
        %v185 = vld [vmem:[%s183] sm:$0xf]
        %v186 = vld [vmem:[%s183 + $0x4] sm:$0xf]
        %v187 = vld [vmem:[%s1] sm:$0xf]
        %v188 = vld [vmem:[%s1 + $0x4] sm:$0xf]
        %v189 = vld [vmem:[%s1 + $0x8] sm:$0xf]
        %v190 = vld [vmem:[%s1 + $0xc] sm:$0xf]
        %v191 = vld [vmem:[%s1 + $0x10] sm:$0xf]
        %v192 = vld [vmem:[%s1 + $0x14] sm:$0xf]
        %v193 = vld [vmem:[%s1 + $0x18] sm:$0xf]
        %v194 = vld [vmem:[%s1 + $0x1c] sm:$0xf]
        %v195 = vld [vmem:[%s1 + $0x20] sm:$0xf]
        %v196 = vld [vmem:[%s1 + $0x24] sm:$0xf]
        %v197 = vld [vmem:[%s1 + $0x28] sm:$0xf]
        %v198 = vld [vmem:[%s1 + $0x2c] sm:$0xf]
        %v211 = vunpack.c.l.b16 %v187
        %v212 = vunpack.c.l.b16 %v188
        %v213 = vunpack.c.l.b16 %v189
        %v214 = vunpack.c.l.b16 %v190
        %v215 = vunpack.c.l.b16 %v191
        %v216 = vunpack.c.l.b16 %v192
        %v217 = vunpack.c.l.b16 %v193
        %v218 = vunpack.c.l.b16 %v194
        %v219 = vunpack.c.l.b16 %v195
        %v220 = vunpack.c.l.b16 %v196
        %v221 = vunpack.c.l.b16 %v197
        %v222 = vunpack.c.l.b16 %v198
        %v223 = vpack.c.b16 %v212, %v211
        %v224 = vpack.c.b16 %v214, %v213
        %v225 = vpack.c.b16 %v216, %v215
        %v226 = vpack.c.b16 %v218, %v217
        %v227 = vpack.c.b16 %v220, %v219
        %v228 = vpack.c.b16 %v222, %v221
        %v231 = vunpack.c.l.b16 %v185
        %v232 = vunpack.c.l.b16 %v186
        %v233 = vpack.c.b16 %v232, %v231
        %vm235 = vcmask 130048
        %v237 = vsel %vm235, %v223, 0
        %v240 = vsel %vm235, %v224, 0
        %v243 = vsel %vm235, %v225, 0
        %v246 = vsel %vm235, %v226, 0
        %v249 = vsel %vm235, %v227, 0
        %v252 = vsel %vm235, %v228, 0
        %254 = vmatprep.subr.bf16.mxu0 0
        %255 = vmatpush1.bf16.msra.mxu0 %v233
        %256 = vmatprep.subr.bf16.mxu0 0
        %257 = vmatpush1.bf16.msra.mxu0 0
        %258 = vmatprep.subr.bf16.mxu0 0
        %259 = vmatpush1.bf16.msra.mxu0 0
        %260 = vmatprep.subr.bf16.mxu0 0
        %261 = vmatpush1.bf16.msra.mxu0 0
        %262 = vmatprep.subr.bf16.mxu0 0
        %263 = vmatpush1.bf16.msra.mxu0 0
        %264 = vmatprep.subr.bf16.mxu0 0
        %265 = vmatpush1.bf16.msra.mxu0 0
        %266 = vmatprep.subr.bf16.mxu0 0
        %267 = vmatpush1.bf16.msra.mxu0 0
        %268 = vmatprep.subr.bf16.mxu0 0
        %269 = vmatpush1.bf16.msra.mxu0 0
        %270 = vmatprep.subr.bf16.mxu0 0
        %271 = vmatpush1.bf16.msra.mxu0 0
        %272 = vmatprep.subr.bf16.mxu0 0
        %273 = vmatpush1.bf16.msra.mxu0 0
        %274 = vmatprep.subr.bf16.mxu0 0
        %275 = vmatpush1.bf16.msra.mxu0 0
        %276 = vmatprep.subr.bf16.mxu0 0
        %277 = vmatpush1.bf16.msra.mxu0 0
        %278 = vmatprep.subr.bf16.mxu0 0
        %279 = vmatpush1.bf16.msra.mxu0 0
        %280 = vmatprep.subr.bf16.mxu0 0
        %281 = vmatpush1.bf16.msra.mxu0 0
        %282 = vmatprep.subr.bf16.mxu0 0
        %283 = vmatpush1.bf16.msra.mxu0 0
        %284 = vmatprep.subr.bf16.mxu0 0
        %285 = vmatpush1.bf16.msra.mxu0 0
        %286 = vmatprep.mubr.bf16.mxu0 0
        %287 = vmatmul.mubr.bf16.gmra.mrb[0].mxu0 %v237
        %v288 = vpop.f32.mrb[0].mxu0
        %v289 = vadd.f32 0.0, %v288
        %v290 = vpop.f32.mrb[0].mxu0
        %v291 = vpop.f32.mrb[0].mxu0
        %v292 = vadd.f32 0.0, %v291
        %v293 = vpop.f32.mrb[0].mxu0
        %294 = vmatprep.mubr.bf16.mxu0 0
        %295 = vmatmul.mubr.bf16.gmra.mrb[0].mxu0 %v240
        %v296 = vpop.f32.mrb[0].mxu0
        %v297 = vadd.f32 0.0, %v296
        %v298 = vpop.f32.mrb[0].mxu0
        %v299 = vpop.f32.mrb[0].mxu0
        %v300 = vadd.f32 0.0, %v299
        %v301 = vpop.f32.mrb[0].mxu0
        %302 = vmatprep.mubr.bf16.mxu0 0
        %303 = vmatmul.mubr.bf16.gmra.mrb[0].mxu0 %v243
        %v304 = vpop.f32.mrb[0].mxu0
        %v305 = vadd.f32 0.0, %v304
        %v306 = vpop.f32.mrb[0].mxu0
        %v307 = vpop.f32.mrb[0].mxu0
        %v308 = vadd.f32 0.0, %v307
        %v309 = vpop.f32.mrb[0].mxu0
        %310 = vmatprep.mubr.bf16.mxu0 0
        %311 = vmatmul.mubr.bf16.gmra.mrb[0].mxu0 %v246
        %v312 = vpop.f32.mrb[0].mxu0
        %v313 = vadd.f32 0.0, %v312
        %v314 = vpop.f32.mrb[0].mxu0
        %v315 = vpop.f32.mrb[0].mxu0
        %v316 = vadd.f32 0.0, %v315
        %v317 = vpop.f32.mrb[0].mxu0
        %318 = vmatprep.mubr.bf16.mxu0 0
        %319 = vmatmul.mubr.bf16.gmra.mrb[0].mxu0 %v249
        %v320 = vpop.f32.mrb[0].mxu0
        %v321 = vadd.f32 0.0, %v320
        %v322 = vpop.f32.mrb[0].mxu0
        %v323 = vpop.f32.mrb[0].mxu0
        %v324 = vadd.f32 0.0, %v323
        %v325 = vpop.f32.mrb[0].mxu0
        %326 = vmatprep.mubr.bf16.mxu0 0
        %327 = vmatmul.mubr.bf16.gmra.mrb[0].mxu0 %v252
        %v328 = vpop.f32.mrb[0].mxu0
        %v329 = vadd.f32 0.0, %v328
        %v330 = vpop.f32.mrb[0].mxu0
        %v331 = vpop.f32.mrb[0].mxu0
        %v332 = vadd.f32 0.0, %v331
        %v333 = vpop.f32.mrb[0].mxu0
        %334 = vdwg.mxu0
        %v335 = vpack.c.bf16 %v292, %v289
        %v336 = vpack.c.bf16 %v300, %v297
        %v337 = vpack.c.bf16 %v308, %v305
        %v338 = vpack.c.bf16 %v316, %v313
        %v339 = vpack.c.bf16 %v324, %v321
        %v340 = vpack.c.bf16 %v332, %v329
        %v341 = vld [vmem:[#allocation2] sm:$0xff]
        %v342 = vld [vmem:[#allocation2 + $0x8] sm:$0xff]
        %v343 = vld [vmem:[#allocation2 + $0x10] sm:$0xff]
        %v344 = vld [vmem:[#allocation2 + $0x18] sm:$0xff]
        %v345 = vld [vmem:[#allocation2 + $0x20] sm:$0xff]
        %v346 = vld [vmem:[#allocation2 + $0x28] sm:$0xff]
        %v347 = vld [vmem:[#allocation2 + $0x30] sm:$0xff]
        %v348 = vld [vmem:[#allocation2 + $0x38] sm:$0xff]
        %v349 = vld [vmem:[#allocation2 + $0x40] sm:$0x11]
        %s350 = scalar_lea.vmem [#allocation2], 72
        %v351 = vld [vmem:[%s350] sm:$0xff]
        %v352 = vld [vmem:[%s350 + $0x8] sm:$0xff]
        %v353 = vld [vmem:[%s350 + $0x10] sm:$0xff]
        %v354 = vld [vmem:[%s350 + $0x18] sm:$0xff]
        %v355 = vld [vmem:[%s350 + $0x20] sm:$0xff]
        %v356 = vld [vmem:[%s350 + $0x28] sm:$0xff]
        %v357 = vld [vmem:[%s350 + $0x30] sm:$0xff]
        %v358 = vld [vmem:[%s350 + $0x38] sm:$0xff]
        %v359 = vld [vmem:[%s350 + $0x40] sm:$0x11]
        %v369 = vunpack.c.l.b16 %v351
        %v370 = vunpack.c.h.b16 %v351
        %v371 = vunpack.c.l.b16 %v352
        %v372 = vunpack.c.h.b16 %v352
        %v373 = vunpack.c.l.b16 %v353
        %v374 = vunpack.c.h.b16 %v353
        %v375 = vunpack.c.l.b16 %v354
        %v376 = vunpack.c.h.b16 %v354
        %v377 = vunpack.c.l.b16 %v355
        %v378 = vunpack.c.h.b16 %v355
        %v379 = vunpack.c.l.b16 %v356
        %v380 = vunpack.c.h.b16 %v356
        %v381 = vunpack.c.l.b16 %v357
        %v382 = vunpack.c.h.b16 %v357
        %v383 = vunpack.c.l.b16 %v358
        %v384 = vunpack.c.h.b16 %v358
        %v385 = vunpack.c.l.b16 %v359
        %v386 = vunpack.c.h.b16 %v359
        %v387 = vpack.c.b16 %v371, %v369
        %v388 = vpack.c.b16 %v372, %v370
        %v389 = vpack.c.b16 %v375, %v373
        %v390 = vpack.c.b16 %v376, %v374
        %v391 = vpack.c.b16 %v379, %v377
        %v392 = vpack.c.b16 %v380, %v378
        %v393 = vpack.c.b16 %v383, %v381
        %v394 = vpack.c.b16 %v384, %v382
        %v395 = vpack.c.b16 %v385, %v385
        %v396 = vpack.c.b16 %v386, %v386
        %vm405 = vcmask 531456
        %v407 = vsel %vm405, %v337, 0
        %v410 = vsel %vm405, %v338, 0
        %vm412 = vcmask 1040384
        %v413 = vsel 0, 4294967295, 65535
        %v414 = vsel %vm412, %v413, 0
        %v416 = vand.u32 %v395, %v414
        %v419 = vand.u32 %v396, %v414
        %421 = vmatprep.subr.bf16.mxu0 %v388
        %422 = vmatpush1.bf16.msra.mxu0 %v387
        %423 = vmatprep.subr.bf16.mxu0 %v390
        %424 = vmatpush1.bf16.msra.mxu0 %v389
        %425 = vmatprep.subr.bf16.mxu0 %v392
        %426 = vmatpush1.bf16.msra.mxu0 %v391
        %427 = vmatprep.subr.bf16.mxu0 %v394
        %428 = vmatpush1.bf16.msra.mxu0 %v393
        %429 = vmatprep.subr.bf16.mxu0 %v419
        %430 = vmatpush1.bf16.msra.mxu0 %v416
        %431 = vmatprep.subr.bf16.mxu0 0
        %432 = vmatpush1.bf16.msra.mxu0 0
        %433 = vmatprep.subr.bf16.mxu0 0
        %434 = vmatpush1.bf16.msra.mxu0 0
        %435 = vmatprep.subr.bf16.mxu0 0
        %436 = vmatpush1.bf16.msra.mxu0 0
        %437 = vmatprep.subr.bf16.mxu0 0
        %438 = vmatpush1.bf16.msra.mxu0 0
        %439 = vmatprep.subr.bf16.mxu0 0
        %440 = vmatpush1.bf16.msra.mxu0 0
        %441 = vmatprep.subr.bf16.mxu0 0
        %442 = vmatpush1.bf16.msra.mxu0 0
        %443 = vmatprep.subr.bf16.mxu0 0
        %444 = vmatpush1.bf16.msra.mxu0 0
        %445 = vmatprep.subr.bf16.mxu0 0
        %446 = vmatpush1.bf16.msra.mxu0 0
        %447 = vmatprep.subr.bf16.mxu0 0
        %448 = vmatpush1.bf16.msra.mxu0 0
        %449 = vmatprep.subr.bf16.mxu0 0
        %450 = vmatpush1.bf16.msra.mxu0 0
        %451 = vmatprep.subr.bf16.mxu0 0
        %452 = vmatpush1.bf16.msra.mxu0 0
        %453 = vmatprep.mubr.bf16.mxu0 0
        %454 = vmatmul.mubr.bf16.gmra.mrb[0].mxu0 %v407
        %v455 = vpop.f32.mrb[0].mxu0
        %v456 = vadd.f32 0.0, %v455
        %v457 = vpop.f32.mrb[0].mxu0
        %v458 = vadd.f32 0.0, %v457
        %v459 = vpop.f32.mrb[0].mxu0
        %v460 = vadd.f32 0.0, %v459
        %v461 = vpop.f32.mrb[0].mxu0
        %v462 = vadd.f32 0.0, %v461
        %463 = vmatprep.mubr.bf16.mxu0 0
        %464 = vmatmul.mubr.bf16.gmra.mrb[0].mxu0 %v410
        %v465 = vpop.f32.mrb[0].mxu0
        %v466 = vadd.f32 0.0, %v465
        %v467 = vpop.f32.mrb[0].mxu0
        %v468 = vadd.f32 0.0, %v467
        %v469 = vpop.f32.mrb[0].mxu0
        %v470 = vadd.f32 0.0, %v469
        %v471 = vpop.f32.mrb[0].mxu0
        %v472 = vadd.f32 0.0, %v471
        %473 = vdwg.mxu0
        %v483 = vunpack.c.l.b16 %v341
        %v484 = vunpack.c.h.b16 %v341
        %v485 = vunpack.c.l.b16 %v342
        %v486 = vunpack.c.h.b16 %v342
        %v487 = vunpack.c.l.b16 %v343
        %v488 = vunpack.c.h.b16 %v343
        %v489 = vunpack.c.l.b16 %v344
        %v490 = vunpack.c.h.b16 %v344
        %v491 = vunpack.c.l.b16 %v345
        %v492 = vunpack.c.h.b16 %v345
        %v493 = vunpack.c.l.b16 %v346
        %v494 = vunpack.c.h.b16 %v346
        %v495 = vunpack.c.l.b16 %v347
        %v496 = vunpack.c.h.b16 %v347
        %v497 = vunpack.c.l.b16 %v348
        %v498 = vunpack.c.h.b16 %v348
        %v499 = vunpack.c.l.b16 %v349
        %v500 = vunpack.c.h.b16 %v349
        %v501 = vpack.c.b16 %v485, %v483
        %v502 = vpack.c.b16 %v486, %v484
        %v503 = vpack.c.b16 %v489, %v487
        %v504 = vpack.c.b16 %v490, %v488
        %v505 = vpack.c.b16 %v493, %v491
        %v506 = vpack.c.b16 %v494, %v492
        %v507 = vpack.c.b16 %v497, %v495
        %v508 = vpack.c.b16 %v498, %v496
        %v509 = vpack.c.b16 %v499, %v499
        %v510 = vpack.c.b16 %v500, %v500
        %v520 = vsel %vm405, %v335, 0
        %v523 = vsel %vm405, %v336, 0
        %v526 = vand.u32 %v509, %v414
        %v529 = vand.u32 %v510, %v414
        %531 = vmatprep.subr.bf16.mxu0 %v502
        %532 = vmatpush1.bf16.msra.mxu0 %v501
        %533 = vmatprep.subr.bf16.mxu0 %v504
        %534 = vmatpush1.bf16.msra.mxu0 %v503
        %535 = vmatprep.subr.bf16.mxu0 %v506
        %536 = vmatpush1.bf16.msra.mxu0 %v505
        %537 = vmatprep.subr.bf16.mxu0 %v508
        %538 = vmatpush1.bf16.msra.mxu0 %v507
        %539 = vmatprep.subr.bf16.mxu0 %v529
        %540 = vmatpush1.bf16.msra.mxu0 %v526
        %541 = vmatprep.subr.bf16.mxu0 0
        %542 = vmatpush1.bf16.msra.mxu0 0
        %543 = vmatprep.subr.bf16.mxu0 0
        %544 = vmatpush1.bf16.msra.mxu0 0
        %545 = vmatprep.subr.bf16.mxu0 0
        %546 = vmatpush1.bf16.msra.mxu0 0
        %547 = vmatprep.subr.bf16.mxu0 0
        %548 = vmatpush1.bf16.msra.mxu0 0
        %549 = vmatprep.subr.bf16.mxu0 0
        %550 = vmatpush1.bf16.msra.mxu0 0
        %551 = vmatprep.subr.bf16.mxu0 0
        %552 = vmatpush1.bf16.msra.mxu0 0
        %553 = vmatprep.subr.bf16.mxu0 0
        %554 = vmatpush1.bf16.msra.mxu0 0
        %555 = vmatprep.subr.bf16.mxu0 0
        %556 = vmatpush1.bf16.msra.mxu0 0
        %557 = vmatprep.subr.bf16.mxu0 0
        %558 = vmatpush1.bf16.msra.mxu0 0
        %559 = vmatprep.subr.bf16.mxu0 0
        %560 = vmatpush1.bf16.msra.mxu0 0
        %561 = vmatprep.subr.bf16.mxu0 0
        %562 = vmatpush1.bf16.msra.mxu0 0
        %563 = vmatprep.mubr.bf16.mxu0 0
        %564 = vmatmul.mubr.bf16.gmra.mrb[0].mxu0 %v520
        %v565 = vpop.f32.mrb[0].mxu0
        %v566 = vadd.f32 %v456, %v565
        %v567 = vpop.f32.mrb[0].mxu0
        %v568 = vadd.f32 %v458, %v567
        %v569 = vpop.f32.mrb[0].mxu0
        %v570 = vadd.f32 %v460, %v569
        %v571 = vpop.f32.mrb[0].mxu0
        %v572 = vadd.f32 %v462, %v571
        %573 = vmatprep.mubr.bf16.mxu0 0
        %574 = vmatmul.mubr.bf16.gmra.mrb[0].mxu0 %v523
        %v575 = vpop.f32.mrb[0].mxu0
        %v576 = vadd.f32 %v466, %v575
        %v577 = vpop.f32.mrb[0].mxu0
        %v578 = vadd.f32 %v468, %v577
        %v579 = vpop.f32.mrb[0].mxu0
        %v580 = vadd.f32 %v470, %v579
        %v581 = vpop.f32.mrb[0].mxu0
        %v582 = vadd.f32 %v472, %v581
        %583 = vdwg.mxu0
        %s584 = scalar_lea.vmem [#allocation2], 144
        %v585 = vld [vmem:[%s584] sm:$0xff]
        %v586 = vld [vmem:[%s584 + $0x8] sm:$0xff]
        %v587 = vld [vmem:[%s584 + $0x10] sm:$0xff]
        %v588 = vld [vmem:[%s584 + $0x18] sm:$0xff]
        %v589 = vld [vmem:[%s584 + $0x20] sm:$0xff]
        %v590 = vld [vmem:[%s584 + $0x28] sm:$0xff]
        %v591 = vld [vmem:[%s584 + $0x30] sm:$0xff]
        %v592 = vld [vmem:[%s584 + $0x38] sm:$0xff]
        %v593 = vld [vmem:[%s584 + $0x40] sm:$0x11]
        %v603 = vunpack.c.l.b16 %v585
        %v604 = vunpack.c.h.b16 %v585
        %v605 = vunpack.c.l.b16 %v586
        %v606 = vunpack.c.h.b16 %v586
        %v607 = vunpack.c.l.b16 %v587
        %v608 = vunpack.c.h.b16 %v587
        %v609 = vunpack.c.l.b16 %v588
        %v610 = vunpack.c.h.b16 %v588
        %v611 = vunpack.c.l.b16 %v589
        %v612 = vunpack.c.h.b16 %v589
        %v613 = vunpack.c.l.b16 %v590
        %v614 = vunpack.c.h.b16 %v590
        %v615 = vunpack.c.l.b16 %v591
        %v616 = vunpack.c.h.b16 %v591
        %v617 = vunpack.c.l.b16 %v592
        %v618 = vunpack.c.h.b16 %v592
        %v619 = vunpack.c.l.b16 %v593
        %v620 = vunpack.c.h.b16 %v593
        %v621 = vpack.c.b16 %v605, %v603
        %v622 = vpack.c.b16 %v606, %v604
        %v623 = vpack.c.b16 %v609, %v607
        %v624 = vpack.c.b16 %v610, %v608
        %v625 = vpack.c.b16 %v613, %v611
        %v626 = vpack.c.b16 %v614, %v612
        %v627 = vpack.c.b16 %v617, %v615
        %v628 = vpack.c.b16 %v618, %v616
        %v629 = vpack.c.b16 %v619, %v619
        %v630 = vpack.c.b16 %v620, %v620
        %v640 = vsel %vm405, %v339, 0
        %v643 = vsel %vm405, %v340, 0
        %v646 = vand.u32 %v629, %v414
        %v649 = vand.u32 %v630, %v414
        %651 = vmatprep.subr.bf16.mxu0 %v622
        %652 = vmatpush1.bf16.msra.mxu0 %v621
        %653 = vmatprep.subr.bf16.mxu0 %v624
        %654 = vmatpush1.bf16.msra.mxu0 %v623
        %655 = vmatprep.subr.bf16.mxu0 %v626
        %656 = vmatpush1.bf16.msra.mxu0 %v625
        %657 = vmatprep.subr.bf16.mxu0 %v628
        %658 = vmatpush1.bf16.msra.mxu0 %v627
        %659 = vmatprep.subr.bf16.mxu0 %v649
        %660 = vmatpush1.bf16.msra.mxu0 %v646
        %661 = vmatprep.subr.bf16.mxu0 0
        %662 = vmatpush1.bf16.msra.mxu0 0
        %663 = vmatprep.subr.bf16.mxu0 0
        %664 = vmatpush1.bf16.msra.mxu0 0
        %665 = vmatprep.subr.bf16.mxu0 0
        %666 = vmatpush1.bf16.msra.mxu0 0
        %667 = vmatprep.subr.bf16.mxu0 0
        %668 = vmatpush1.bf16.msra.mxu0 0
        %669 = vmatprep.subr.bf16.mxu0 0
        %670 = vmatpush1.bf16.msra.mxu0 0
        %671 = vmatprep.subr.bf16.mxu0 0
        %672 = vmatpush1.bf16.msra.mxu0 0
        %673 = vmatprep.subr.bf16.mxu0 0
        %674 = vmatpush1.bf16.msra.mxu0 0
        %675 = vmatprep.subr.bf16.mxu0 0
        %676 = vmatpush1.bf16.msra.mxu0 0
        %677 = vmatprep.subr.bf16.mxu0 0
        %678 = vmatpush1.bf16.msra.mxu0 0
        %679 = vmatprep.subr.bf16.mxu0 0
        %680 = vmatpush1.bf16.msra.mxu0 0
        %681 = vmatprep.subr.bf16.mxu0 0
        %682 = vmatpush1.bf16.msra.mxu0 0
        %683 = vmatprep.mubr.bf16.mxu0 0
        %684 = vmatmul.mubr.bf16.gmra.mrb[0].mxu0 %v640
        %v685 = vpop.f32.mrb[0].mxu0
        %v686 = vadd.f32 0.0, %v685
        %v687 = vpop.f32.mrb[0].mxu0
        %v688 = vadd.f32 0.0, %v687
        %v689 = vpop.f32.mrb[0].mxu0
        %v690 = vadd.f32 0.0, %v689
        %v691 = vpop.f32.mrb[0].mxu0
        %v692 = vadd.f32 0.0, %v691
        %693 = vmatprep.mubr.bf16.mxu0 0
        %694 = vmatmul.mubr.bf16.gmra.mrb[0].mxu0 %v643
        %v695 = vpop.f32.mrb[0].mxu0
        %v696 = vadd.f32 0.0, %v695
        %v697 = vpop.f32.mrb[0].mxu0
        %v698 = vadd.f32 0.0, %v697
        %v699 = vpop.f32.mrb[0].mxu0
        %v700 = vadd.f32 0.0, %v699
        %v701 = vpop.f32.mrb[0].mxu0
        %v702 = vadd.f32 0.0, %v701
        %703 = vdwg.mxu0
        %v704 = vadd.f32 %v566, %v686
        %v705 = vadd.f32 %v568, %v688
        %v706 = vadd.f32 %v570, %v690
        %v707 = vadd.f32 %v572, %v692
        %v708 = vadd.f32 %v576, %v696
        %v709 = vadd.f32 %v578, %v698
        %v710 = vadd.f32 %v580, %v700
        %v711 = vadd.f32 %v582, %v702
        %v712 = vmax.f32 %v704, 0.0
        %v713 = vmax.f32 %v705, 0.0
        %v714 = vmax.f32 %v706, 0.0
        %v715 = vmax.f32 %v707, 0.0
        %v716 = vmax.f32 %v708, 0.0
        %v717 = vmax.f32 %v709, 0.0
        %v718 = vmax.f32 %v710, 0.0
        %v719 = vmax.f32 %v711, 0.0
        %720 = vst [vmem:[%s178] sm:$0xff] %v712
        %721 = vst [vmem:[%s178 + $0x8] sm:$0xff] %v713
        %722 = vst [vmem:[%s178 + $0x10] sm:$0xff] %v714
        %723 = vst [vmem:[%s178 + $0x18] sm:$0xff] %v715
        %724 = vst [vmem:[%s178 + $0x20] sm:$0xff] %v716
        %725 = vst [vmem:[%s178 + $0x28] sm:$0xff] %v717
        %726 = vst [vmem:[%s178 + $0x30] sm:$0xff] %v718
        %727 = vst [vmem:[%s178 + $0x38] sm:$0xff] %v719
        %s728 = sand.u32 %s94, 1
        %s729 = scalar_lea.sflag [#allocation4], %s728
        %s730 = sand.u32 %s94, 1
        %s731 = smul.addr %s730, 64
        %s732 = scalar_lea.vmem [#allocation5], %s731
        // Predicated region
        $region37: #{tpu_custom_call.1} parent=31 // pred_check
          %p733 = pneg %p104
        $region38: #{tpu_custom_call.1} parent=31 // pred_check_branch
          %735 = sbr.rel (%p733) target = $region40
        $region39: #{tpu_custom_call.1} parent=31 // pred_region
          %s737 = ssub.s32 1024, 1024
          %738 = vsyncadd %s729, %s737
          %s739 = smul.addr %s18, 8
          %s740 = smul.addr %s739, 128
          %s741 = scalar_lea.hbm %s3, %s740
          %s742 = sshll.u32 %s732, 4
          %s743 = int_to_ptr.vmem [resolvable:$true] %s742
          %748 = dma.vmem_to_hbm [thread:$0]  %s743, 1024, %s741, %s729, 256, 256, 16
        $region40: #{tpu_custom_call.1} parent=31 // pred_fallthru
          _
      $region32: #{tpu_custom_call.1} parent=5 // pred_fallthru
        _
      %p749 = scmp.le.s32.totalorder 2, %s13
      // Predicated region
      $region41: #{tpu_custom_call.1} parent=5 // pred_check
        %p750 = pneg %p749
      $region42: #{tpu_custom_call.1} parent=5 // pred_check_branch
        %752 = sbr.rel (%p750) target = $region44
      $region43: #{tpu_custom_call.1} parent=5 // pred_region
        %s753 = ssub.s32 %s13, 2
        // Predicated region
        $region45: #{tpu_custom_call.1} parent=43 // pred_check
          %p754 = pneg %p110
        $region46: #{tpu_custom_call.1} parent=43 // pred_check_branch
          %756 = sbr.rel (%p754) target = $region48
        $region47: #{tpu_custom_call.1} parent=43 // pred_region
          %s757 = sand.u32 %s95, 1
          %s758 = scalar_lea.sflag [#allocation4], %s757
          %s759 = sand.u32 %s95, 1
          %s760 = smul.addr %s759, 64
          %s761 = scalar_lea.vmem [#allocation5], %s760
          %762 = dma.done %s758, 1024
        $region48: #{tpu_custom_call.1} parent=43 // pred_fallthru
          _
      $region44: #{tpu_custom_call.1} parent=5 // pred_fallthru
        _
    $region6: #{tpu_custom_call.1} parent=1 // loop_footer
      %s17 = sadd.s32 1, %s13
    $region7: #{tpu_custom_call.1} parent=1 // loop_footer_branch
      %12 = sbr.rel target = $region3
    $region8: #{tpu_custom_call.1} parent=1 // loop_exit
      _
    %763 = vsyncpa [#allocation3], 1
    %s764 = scalar_lea.sflag [#allocation3], 1
    %765 = vsyncpa %s764, 1
    %766 = vsyncpa [#allocation4], 1
    %s767 = scalar_lea.sflag [#allocation4], 1
    %768 = vsyncpa %s767, 1

</llo_original>
